<compile_context>
chip_gen: v5e
topology: v5e:2x2
jax: 0.10.0
libtpu: 0.0.40
codegen_flags: <defaults>
</compile_context>

<pallas_src>
import jax
import jax.numpy as jnp
from jax.experimental import pallas as pl
from jax.experimental.pallas import tpu as pltpu

MODEL_DIM = 128


def leaky_relu(x, slope=0.2):
    return jnp.where(x > 0, x, slope * x)


def _round_up(v, m):
    return (v + m - 1) // m * m


# ----------------------------------------------------------------------------
# Parameter construction (deterministic, PyTorch nn.Linear-style init)
# ----------------------------------------------------------------------------
def _linear_params(key, fan_in, fan_out):
    kw, kb = jax.random.split(key)
    k = 1.0 / jnp.sqrt(jnp.float32(fan_in))
    W = jax.random.uniform(kw, (fan_in, fan_out), jnp.float32, -k, k)
    b = jax.random.uniform(kb, (1, fan_out), jnp.float32, -k, k)
    return W, b


def _linear_output_stack_params(key, channels, layers, in_channels=None,
                                out_channels=None):
    in_ch = in_channels or channels
    out_ch = out_channels or channels
    keys = jax.random.split(key, layers + 1)
    params = []
    d = in_ch
    for i in range(layers):
        W, b = _linear_params(keys[i], d, channels)
        params += [W, b]
        d = channels
    W, b = _linear_params(keys[layers], channels, out_ch)
    params += [W, b]
    return params  # flat list [W1, b1, W2, b2, W3, b3]


def make_layer_params(key, in_channels, out_channels):
    k_nerf, k_w, k_b = jax.random.split(key, 3)
    nerf = _linear_output_stack_params(
        k_nerf, MODEL_DIM, 2, in_channels=in_channels, out_channels=out_channels)
    mod_w = _linear_output_stack_params(k_w, MODEL_DIM, 2)
    mod_b = _linear_output_stack_params(k_b, MODEL_DIM, 2)
    return nerf, mod_w, mod_b


# ----------------------------------------------------------------------------
# One-time packing (hoisted off the hot path; call once, reuse every forward).
# ----------------------------------------------------------------------------
def pack_layer_params(nerf_params, mod_w_params, mod_b_params,
                      *, matmul_dtype=jnp.bfloat16):
    nW1, nb1, nW2, nb2, nW3, nb3 = nerf_params
    assert nW3.shape[1] == MODEL_DIM, \
        "Modulator broadcast requires out_channels == model_dim"
    W1 = nW1.astype(matmul_dtype)                               # (C_in, 128)
    W23 = jnp.stack([nW2, nW3], axis=0).astype(matmul_dtype)    # (2, 128, 128)
    nbias = jnp.concatenate([nb1, nb2, nb3], axis=0)            # (3, 128) f32

    wW1, wb1, wW2, wb2, wW3, wb3 = mod_w_params
    bW1, bb1, bW2, bb2, bW3, bb3 = mod_b_params
    modW = jnp.stack([wW1, wW2, wW3, bW1, bW2, bW3], axis=0)     # (6,128,128) f32
    modB = jnp.concatenate([wb1, wb2, wb3, bb1, bb2, bb3], axis=0)  # (6,128) f32
    return W1, W23, nbias, modW, modB


# ----------------------------------------------------------------------------
# Fused kernel: Modulator FiLM params + NerfLayer stack + FiLM epilogue.
# ----------------------------------------------------------------------------
def _layer_kernel(x_ref, cond_ref, W1_ref, W23_ref, nb_ref, mW_ref, mB_ref,
                  o_ref):
    act = leaky_relu
    mm_dtype = W1_ref.dtype

    # Modulator: recomputed per tile (6 tiny (1,128)@(128,128) f32 matmuls,
    # negligible vs. the row-tile matmuls; avoids any cross-step state).
    cond = cond_ref[0]                                          # (1, 128) f32
    cw = act(jnp.dot(cond, mW_ref[0], preferred_element_type=jnp.float32)
             + mB_ref[0:1, :])
    cw = act(jnp.dot(cw, mW_ref[1], preferred_element_type=jnp.float32)
             + mB_ref[1:2, :])
    w = jnp.dot(cw, mW_ref[2], preferred_element_type=jnp.float32) + mB_ref[2:3, :]

    cb = act(jnp.dot(cond, mW_ref[3], preferred_element_type=jnp.float32)
             + mB_ref[3:4, :])
    cb = act(jnp.dot(cb, mW_ref[4], preferred_element_type=jnp.float32)
             + mB_ref[4:5, :])
    b = jnp.dot(cb, mW_ref[5], preferred_element_type=jnp.float32) + mB_ref[5:6, :]

    # NerfLayer: LinearOutputStack(128, 2, in=C_in, out=128) + activation.
    # x is cast to the matmul dtype IN-KERNEL (no separate host astype pass);
    # MXU accumulates in f32, elementwise epilogue stays f32.
    x = x_ref[0].astype(mm_dtype)                               # (TN, C_in)
    h = jnp.dot(x, W1_ref[...], preferred_element_type=jnp.float32) + nb_ref[0:1, :]
    h = act(h)
    h = jnp.dot(h.astype(mm_dtype), W23_ref[0],
                preferred_element_type=jnp.float32) + nb_ref[1:2, :]
    h = act(h)
    h = jnp.dot(h.astype(mm_dtype), W23_ref[1],
                preferred_element_type=jnp.float32) + nb_ref[2:3, :]
    xn = act(h)                                                 # (TN, 128) f32

    # FiLM modulation + activation (broadcast over rows).
    o_ref[0] = act(xn * w + b).astype(o_ref.dtype)


def _choose_row_tile(N, B, tn_max):
    tn_max = max(8, (tn_max // 8) * 8)
    if N <= tn_max:
        tn = N  # full-axis block (valid for any N, no padding needed)
        # v7x: with B == 1 a single tile serializes onto one TensorCore; split
        # so both cores get a grid step (keep tiles >= 256 rows).
        if B == 1 and N > 512:
            tn = min(max(256, _round_up(pl.cdiv(N, 2), 8)), tn_max)
    else:
        tn = tn_max
    return tn


def layer_forward(x, cond, packed_params, *, tn_max=2048, out_dtype=jnp.float32):
    """x: (B, N, C_in) f32, cond: (B, MODEL_DIM) f32 -> (B, N, MODEL_DIM)."""
    B, N, C_in = x.shape
    W1, W23, nbias, modW, modB = packed_params
    assert cond.shape == (B, MODEL_DIM)
    assert W1.shape == (C_in, MODEL_DIM)

    cond3 = cond.reshape(B, 1, MODEL_DIM)

    TN = _choose_row_tile(N, B, tn_max)
    n_tiles = pl.cdiv(N, TN)
    out_itemsize = jnp.dtype(out_dtype).itemsize

    flops = (2 * B * N * MODEL_DIM * (C_in + 2 * MODEL_DIM)
             + B * n_tiles * 12 * MODEL_DIM * MODEL_DIM
             + 6 * B * N * MODEL_DIM)
    bytes_accessed = (x.size * x.dtype.itemsize
                      + B * N * MODEL_DIM * out_itemsize
                      + cond.size * 4
                      + W1.size * W1.dtype.itemsize
                      + W23.size * W23.dtype.itemsize
                      + nbias.size * 4 + modW.size * 4 + modB.size * 4)

    # VMEM working-set estimate (double-buffered x/out blocks + f32
    # intermediates + resident weights).  Only raise the scoped limit when the
    # default 32 MiB would be exceeded (matters on v7x's 64 MiB physical VMEM).
    vmem_est = (2 * TN * C_in * x.dtype.itemsize
                + 2 * TN * MODEL_DIM * out_itemsize
                + 4 * TN * MODEL_DIM * 4
                + 2 * (W1.size * W1.dtype.itemsize
                       + W23.size * W23.dtype.itemsize + modW.size * 4)
                + (1 << 20))
    cp_kwargs = dict(dimension_semantics=("parallel", "parallel"))
    if vmem_est > (30 << 20):
        cp_kwargs["vmem_limit_bytes"] = min(int(vmem_est * 3 // 2), 100 << 20)

    return pl.pallas_call(
        _layer_kernel,
        out_shape=jax.ShapeDtypeStruct((B, N, MODEL_DIM), out_dtype),
        grid_spec=pltpu.PrefetchScalarGridSpec(
            num_scalar_prefetch=0,
            grid=(B, n_tiles),
            in_specs=[
                pl.BlockSpec((1, TN, C_in), lambda b, n: (b, n, 0)),
                pl.BlockSpec((1, 1, MODEL_DIM), lambda b, n: (b, 0, 0)),
                pl.BlockSpec(W1.shape, lambda b, n: (0, 0)),
                pl.BlockSpec(W23.shape, lambda b, n: (0, 0, 0)),
                pl.BlockSpec(nbias.shape, lambda b, n: (0, 0)),
                pl.BlockSpec(modW.shape, lambda b, n: (0, 0, 0)),
                pl.BlockSpec(modB.shape, lambda b, n: (0, 0)),
            ],
            out_specs=pl.BlockSpec((1, TN, MODEL_DIM), lambda b, n: (b, n, 0)),
        ),
        compiler_params=pltpu.CompilerParams(**cp_kwargs),
        cost_estimate=pl.CostEstimate(flops=flops, transcendentals=0,
                                      bytes_accessed=bytes_accessed),
    )(x, cond3, W1, W23, nbias, modW, modB)


# ----------------------------------------------------------------------------
# Pure-JAX reference (correctness check)
# ----------------------------------------------------------------------------
def _stack_apply(params, x):
    n = len(params) // 2
    for i in range(n):
        W, b = params[2 * i], params[2 * i + 1]
        x = x @ W + b
        if i < n - 1:
            x = leaky_relu(x)
    return x


def layer_reference(x, cond, nerf_params, mod_w_params, mod_b_params):
    xn = leaky_relu(_stack_apply(nerf_params, x))
    w = _stack_apply(mod_w_params, cond)[:, None, :]
    b = _stack_apply(mod_b_params, cond)[:, None, :]
    return leaky_relu(xn * w + b)


if __name__ == "__main__":
    B, N, C_IN, C_OUT = 2, 8, 32, MODEL_DIM

    key = jax.random.PRNGKey(0)
    k_x, k_c, k_p, k_x2 = jax.random.split(key, 4)
    x = jax.random.normal(k_x, (B, N, C_IN), jnp.float32)
    cond = jax.random.normal(k_c, (B, MODEL_DIM), jnp.float32)

    nerf_p, modw_p, modb_p = make_layer_params(k_p, C_IN, C_OUT)
    ref = layer_reference(x, cond, nerf_p, modw_p, modb_p)

    # Default path: bf16 MXU inputs (cast in-kernel), f32 accumulation/output.
    packed_bf16 = pack_layer_params(nerf_p, modw_p, modb_p,
                                    matmul_dtype=jnp.bfloat16)
    out = jax.block_until_ready(layer_forward(x, cond, packed_bf16))
    assert out.shape == (B, N, C_OUT)
    assert jnp.allclose(out, ref, atol=5e-2, rtol=5e-2), \
        "mismatch vs JAX reference (bf16 matmul path)"

    # bf16 output path (halves the dominant HBM write traffic).
    out_bf16 = jax.block_until_ready(
        layer_forward(x, cond, packed_bf16, out_dtype=jnp.bfloat16))
    assert out_bf16.dtype == jnp.bfloat16
    assert jnp.allclose(out_bf16.astype(jnp.float32), ref, atol=1e-1, rtol=1e-1), \
        "mismatch vs JAX reference (bf16 output path)"

    # Full-f32 path: tight match against the reference.
    packed_f32 = pack_layer_params(nerf_p, modw_p, modb_p,
                                   matmul_dtype=jnp.float32)
    out_f32 = jax.block_until_ready(layer_forward(x, cond, packed_f32))
    assert jnp.allclose(out_f32, ref, atol=1e-4, rtol=1e-4), \
        "mismatch vs JAX reference (f32 path)"

    # Ragged tiling (N not a multiple of TN) with no host-side pad/slice:
    # exercises the Pallas partial-tile writeback path.
    N2 = 200
    x2 = jax.random.normal(k_x2, (B, N2, C_IN), jnp.float32)
    ref2 = layer_reference(x2, cond, nerf_p, modw_p, modb_p)
    out2 = jax.block_until_ready(layer_forward(x2, cond, packed_f32, tn_max=64))
    assert out2.shape == (B, N2, C_OUT)
    assert jnp.allclose(out2, ref2, atol=1e-4, rtol=1e-4), \
        "mismatch vs JAX reference (ragged-tile path)"

    print("KERNEL_OK")
</pallas_src>

<mosaic_0001>
module attributes {stable_mosaic.version = 11 : i64} {
  func.func @_layer_kernel(%arg0: i32, %arg1: i32, %arg2: memref<1x8x32xf32, #tpu.memory_space<vmem>>, %arg3: memref<1x1x128xf32, #tpu.memory_space<vmem>>, %arg4: memref<32x128xbf16, #tpu.memory_space<vmem>>, %arg5: memref<2x128x128xbf16, #tpu.memory_space<vmem>>, %arg6: memref<3x128xf32, #tpu.memory_space<vmem>>, %arg7: memref<6x128x128xf32, #tpu.memory_space<vmem>>, %arg8: memref<6x128xf32, #tpu.memory_space<vmem>>, %arg9: memref<1x8x128xf32, #tpu.memory_space<vmem>>) attributes {dimension_semantics = [#tpu.dimension_semantics<parallel>, #tpu.dimension_semantics<parallel>], iteration_bounds = array<i64: 2, 1>, scalar_prefetch = 0 : i64, scratch_operands = 0 : i64, tpu.core_type = #tpu.core_type<tc>, window_params = [{transform_indices = @transform_0, window_bounds = array<i64: 1, 8, 32>}, {transform_indices = @transform_1, window_bounds = array<i64: 1, 1, 128>}, {pipeline_mode = #tpu.pipeline_mode<synchronous>, transform_indices = @transform_2, window_bounds = array<i64: 32, 128>}, {pipeline_mode = #tpu.pipeline_mode<synchronous>, transform_indices = @transform_3, window_bounds = array<i64: 2, 128, 128>}, {pipeline_mode = #tpu.pipeline_mode<synchronous>, transform_indices = @transform_4, window_bounds = array<i64: 3, 128>}, {pipeline_mode = #tpu.pipeline_mode<synchronous>, transform_indices = @transform_5, window_bounds = array<i64: 6, 128, 128>}, {pipeline_mode = #tpu.pipeline_mode<synchronous>, transform_indices = @transform_6, window_bounds = array<i64: 6, 128>}, {transform_indices = @transform_7, window_bounds = array<i64: 1, 8, 128>}]} {
    %c0 = arith.constant 0 : index
    %c0_0 = arith.constant 0 : index
    %c0_1 = arith.constant 0 : index
    %0 = vector.load %arg3[%c0, %c0_0, %c0_1] : memref<1x1x128xf32, #tpu.memory_space<vmem>>, vector<1x1x128xf32>
    %1 = vector.shape_cast %0 : vector<1x1x128xf32> to vector<1x128xf32>
    %c0_2 = arith.constant 0 : index
    %c0_3 = arith.constant 0 : index
    %c0_4 = arith.constant 0 : index
    %2 = vector.load %arg7[%c0_2, %c0_3, %c0_4] : memref<6x128x128xf32, #tpu.memory_space<vmem>>, vector<1x128x128xf32>
    %3 = vector.shape_cast %2 : vector<1x128x128xf32> to vector<128x128xf32>
    %cst = arith.constant dense<0.000000e+00> : vector<1x128xf32>
    %4 = tpu.matmul %1, %3, %cst {dimension_numbers = #tpu.dot_dimension_numbers<[1], [0], [0], [1], [0, 0, 1, 1], [], []>} : vector<1x128xf32>, vector<128x128xf32>, vector<1x128xf32> -> vector<1x128xf32>
    %c0_5 = arith.constant 0 : index
    %c0_6 = arith.constant 0 : index
    %5 = vector.load %arg8[%c0_5, %c0_6] : memref<6x128xf32, #tpu.memory_space<vmem>>, vector<1x128xf32>
    %6 = arith.addf %4, %5 : vector<1x128xf32>
    %cst_7 = arith.constant 0.000000e+00 : f32
    %7 = vector.broadcast %cst_7 : f32 to vector<1x128xf32>
    %8 = arith.cmpf ogt, %6, %7 : vector<1x128xf32>
    %cst_8 = arith.constant 2.000000e-01 : f32
    %9 = vector.broadcast %cst_8 : f32 to vector<1x128xf32>
    %10 = arith.mulf %9, %6 : vector<1x128xf32>
    %11 = arith.select %8, %6, %10 : vector<1x128xi1>, vector<1x128xf32>
    %c1 = arith.constant 1 : index
    %c0_9 = arith.constant 0 : index
    %c0_10 = arith.constant 0 : index
    %12 = vector.load %arg7[%c1, %c0_9, %c0_10] : memref<6x128x128xf32, #tpu.memory_space<vmem>>, vector<1x128x128xf32>
    %13 = vector.shape_cast %12 : vector<1x128x128xf32> to vector<128x128xf32>
    %cst_11 = arith.constant dense<0.000000e+00> : vector<1x128xf32>
    %14 = tpu.matmul %11, %13, %cst_11 {dimension_numbers = #tpu.dot_dimension_numbers<[1], [0], [0], [1], [0, 0, 1, 1], [], []>} : vector<1x128xf32>, vector<128x128xf32>, vector<1x128xf32> -> vector<1x128xf32>
    %c1_12 = arith.constant 1 : index
    %c0_13 = arith.constant 0 : index
    %15 = vector.load %arg8[%c1_12, %c0_13] : memref<6x128xf32, #tpu.memory_space<vmem>>, vector<1x128xf32>
    %16 = arith.addf %14, %15 : vector<1x128xf32>
    %cst_14 = arith.constant 0.000000e+00 : f32
    %17 = vector.broadcast %cst_14 : f32 to vector<1x128xf32>
    %18 = arith.cmpf ogt, %16, %17 : vector<1x128xf32>
    %cst_15 = arith.constant 2.000000e-01 : f32
    %19 = vector.broadcast %cst_15 : f32 to vector<1x128xf32>
    %20 = arith.mulf %19, %16 : vector<1x128xf32>
    %21 = arith.select %18, %16, %20 : vector<1x128xi1>, vector<1x128xf32>
    %c2 = arith.constant 2 : index
    %c0_16 = arith.constant 0 : index
    %c0_17 = arith.constant 0 : index
    %22 = vector.load %arg7[%c2, %c0_16, %c0_17] : memref<6x128x128xf32, #tpu.memory_space<vmem>>, vector<1x128x128xf32>
    %23 = vector.shape_cast %22 : vector<1x128x128xf32> to vector<128x128xf32>
    %cst_18 = arith.constant dense<0.000000e+00> : vector<1x128xf32>
    %24 = tpu.matmul %21, %23, %cst_18 {dimension_numbers = #tpu.dot_dimension_numbers<[1], [0], [0], [1], [0, 0, 1, 1], [], []>} : vector<1x128xf32>, vector<128x128xf32>, vector<1x128xf32> -> vector<1x128xf32>
    %c2_19 = arith.constant 2 : index
    %c0_20 = arith.constant 0 : index
    %25 = vector.load %arg8[%c2_19, %c0_20] : memref<6x128xf32, #tpu.memory_space<vmem>>, vector<1x128xf32>
    %26 = arith.addf %24, %25 : vector<1x128xf32>
    %c3 = arith.constant 3 : index
    %c0_21 = arith.constant 0 : index
    %c0_22 = arith.constant 0 : index
    %27 = vector.load %arg7[%c3, %c0_21, %c0_22] : memref<6x128x128xf32, #tpu.memory_space<vmem>>, vector<1x128x128xf32>
    %28 = vector.shape_cast %27 : vector<1x128x128xf32> to vector<128x128xf32>
    %cst_23 = arith.constant dense<0.000000e+00> : vector<1x128xf32>
    %29 = tpu.matmul %1, %28, %cst_23 {dimension_numbers = #tpu.dot_dimension_numbers<[1], [0], [0], [1], [0, 0, 1, 1], [], []>} : vector<1x128xf32>, vector<128x128xf32>, vector<1x128xf32> -> vector<1x128xf32>
    %c3_24 = arith.constant 3 : index
    %c0_25 = arith.constant 0 : index
    %30 = vector.load %arg8[%c3_24, %c0_25] : memref<6x128xf32, #tpu.memory_space<vmem>>, vector<1x128xf32>
    %31 = arith.addf %29, %30 : vector<1x128xf32>
    %cst_26 = arith.constant 0.000000e+00 : f32
    %32 = vector.broadcast %cst_26 : f32 to vector<1x128xf32>
    %33 = arith.cmpf ogt, %31, %32 : vector<1x128xf32>
    %cst_27 = arith.constant 2.000000e-01 : f32
    %34 = vector.broadcast %cst_27 : f32 to vector<1x128xf32>
    %35 = arith.mulf %34, %31 : vector<1x128xf32>
    %36 = arith.select %33, %31, %35 : vector<1x128xi1>, vector<1x128xf32>
    %c4 = arith.constant 4 : index
    %c0_28 = arith.constant 0 : index
    %c0_29 = arith.constant 0 : index
    %37 = vector.load %arg7[%c4, %c0_28, %c0_29] : memref<6x128x128xf32, #tpu.memory_space<vmem>>, vector<1x128x128xf32>
    %38 = vector.shape_cast %37 : vector<1x128x128xf32> to vector<128x128xf32>
    %cst_30 = arith.constant dense<0.000000e+00> : vector<1x128xf32>
    %39 = tpu.matmul %36, %38, %cst_30 {dimension_numbers = #tpu.dot_dimension_numbers<[1], [0], [0], [1], [0, 0, 1, 1], [], []>} : vector<1x128xf32>, vector<128x128xf32>, vector<1x128xf32> -> vector<1x128xf32>
    %c4_31 = arith.constant 4 : index
    %c0_32 = arith.constant 0 : index
    %40 = vector.load %arg8[%c4_31, %c0_32] : memref<6x128xf32, #tpu.memory_space<vmem>>, vector<1x128xf32>
    %41 = arith.addf %39, %40 : vector<1x128xf32>
    %cst_33 = arith.constant 0.000000e+00 : f32
    %42 = vector.broadcast %cst_33 : f32 to vector<1x128xf32>
    %43 = arith.cmpf ogt, %41, %42 : vector<1x128xf32>
    %cst_34 = arith.constant 2.000000e-01 : f32
    %44 = vector.broadcast %cst_34 : f32 to vector<1x128xf32>
    %45 = arith.mulf %44, %41 : vector<1x128xf32>
    %46 = arith.select %43, %41, %45 : vector<1x128xi1>, vector<1x128xf32>
    %c5 = arith.constant 5 : index
    %c0_35 = arith.constant 0 : index
    %c0_36 = arith.constant 0 : index
    %47 = vector.load %arg7[%c5, %c0_35, %c0_36] : memref<6x128x128xf32, #tpu.memory_space<vmem>>, vector<1x128x128xf32>
    %48 = vector.shape_cast %47 : vector<1x128x128xf32> to vector<128x128xf32>
    %cst_37 = arith.constant dense<0.000000e+00> : vector<1x128xf32>
    %49 = tpu.matmul %46, %48, %cst_37 {dimension_numbers = #tpu.dot_dimension_numbers<[1], [0], [0], [1], [0, 0, 1, 1], [], []>} : vector<1x128xf32>, vector<128x128xf32>, vector<1x128xf32> -> vector<1x128xf32>
    %c5_38 = arith.constant 5 : index
    %c0_39 = arith.constant 0 : index
    %50 = vector.load %arg8[%c5_38, %c0_39] : memref<6x128xf32, #tpu.memory_space<vmem>>, vector<1x128xf32>
    %51 = arith.addf %49, %50 : vector<1x128xf32>
    %c0_40 = arith.constant 0 : index
    %c0_41 = arith.constant 0 : index
    %c0_42 = arith.constant 0 : index
    %52 = vector.load %arg2[%c0_40, %c0_41, %c0_42] : memref<1x8x32xf32, #tpu.memory_space<vmem>>, vector<1x8x32xf32>
    %53 = vector.shape_cast %52 : vector<1x8x32xf32> to vector<8x32xf32>
    %54 = arith.truncf %53 : vector<8x32xf32> to vector<8x32xbf16>
    %c0_43 = arith.constant 0 : index
    %c0_44 = arith.constant 0 : index
    %55 = vector.load %arg4[%c0_43, %c0_44] : memref<32x128xbf16, #tpu.memory_space<vmem>>, vector<32x128xbf16>
    %cst_45 = arith.constant dense<0.000000e+00> : vector<8x128xf32>
    %56 = tpu.matmul %54, %55, %cst_45 {dimension_numbers = #tpu.dot_dimension_numbers<[1], [0], [0], [1], [0, 0, 1, 1], [], []>} : vector<8x32xbf16>, vector<32x128xbf16>, vector<8x128xf32> -> vector<8x128xf32>
    %c0_46 = arith.constant 0 : index
    %c0_47 = arith.constant 0 : index
    %57 = vector.load %arg6[%c0_46, %c0_47] : memref<3x128xf32, #tpu.memory_space<vmem>>, vector<1x128xf32>
    %58 = vector.broadcast %57 : vector<1x128xf32> to vector<8x128xf32>
    %59 = arith.addf %56, %58 : vector<8x128xf32>
    %cst_48 = arith.constant 0.000000e+00 : f32
    %60 = vector.broadcast %cst_48 : f32 to vector<8x128xf32>
    %61 = arith.cmpf ogt, %59, %60 : vector<8x128xf32>
    %cst_49 = arith.constant 2.000000e-01 : f32
    %62 = vector.broadcast %cst_49 : f32 to vector<8x128xf32>
    %63 = arith.mulf %62, %59 : vector<8x128xf32>
    %64 = arith.select %61, %59, %63 : vector<8x128xi1>, vector<8x128xf32>
    %65 = arith.truncf %64 : vector<8x128xf32> to vector<8x128xbf16>
    %c0_50 = arith.constant 0 : index
    %c0_51 = arith.constant 0 : index
    %c0_52 = arith.constant 0 : index
    %66 = vector.load %arg5[%c0_50, %c0_51, %c0_52] : memref<2x128x128xbf16, #tpu.memory_space<vmem>>, vector<1x128x128xbf16>
    %67 = vector.shape_cast %66 : vector<1x128x128xbf16> to vector<128x128xbf16>
    %cst_53 = arith.constant dense<0.000000e+00> : vector<8x128xf32>
    %68 = tpu.matmul %65, %67, %cst_53 {dimension_numbers = #tpu.dot_dimension_numbers<[1], [0], [0], [1], [0, 0, 1, 1], [], []>} : vector<8x128xbf16>, vector<128x128xbf16>, vector<8x128xf32> -> vector<8x128xf32>
    %c1_54 = arith.constant 1 : index
    %c0_55 = arith.constant 0 : index
    %69 = vector.load %arg6[%c1_54, %c0_55] : memref<3x128xf32, #tpu.memory_space<vmem>>, vector<1x128xf32>
    %70 = vector.broadcast %69 : vector<1x128xf32> to vector<8x128xf32>
    %71 = arith.addf %68, %70 : vector<8x128xf32>
    %cst_56 = arith.constant 0.000000e+00 : f32
    %72 = vector.broadcast %cst_56 : f32 to vector<8x128xf32>
    %73 = arith.cmpf ogt, %71, %72 : vector<8x128xf32>
    %cst_57 = arith.constant 2.000000e-01 : f32
    %74 = vector.broadcast %cst_57 : f32 to vector<8x128xf32>
    %75 = arith.mulf %74, %71 : vector<8x128xf32>
    %76 = arith.select %73, %71, %75 : vector<8x128xi1>, vector<8x128xf32>
    %77 = arith.truncf %76 : vector<8x128xf32> to vector<8x128xbf16>
    %c1_58 = arith.constant 1 : index
    %c0_59 = arith.constant 0 : index
    %c0_60 = arith.constant 0 : index
    %78 = vector.load %arg5[%c1_58, %c0_59, %c0_60] : memref<2x128x128xbf16, #tpu.memory_space<vmem>>, vector<1x128x128xbf16>
    %79 = vector.shape_cast %78 : vector<1x128x128xbf16> to vector<128x128xbf16>
    %cst_61 = arith.constant dense<0.000000e+00> : vector<8x128xf32>
    %80 = tpu.matmul %77, %79, %cst_61 {dimension_numbers = #tpu.dot_dimension_numbers<[1], [0], [0], [1], [0, 0, 1, 1], [], []>} : vector<8x128xbf16>, vector<128x128xbf16>, vector<8x128xf32> -> vector<8x128xf32>
    %c2_62 = arith.constant 2 : index
    %c0_63 = arith.constant 0 : index
    %81 = vector.load %arg6[%c2_62, %c0_63] : memref<3x128xf32, #tpu.memory_space<vmem>>, vector<1x128xf32>
    %82 = vector.broadcast %81 : vector<1x128xf32> to vector<8x128xf32>
    %83 = arith.addf %80, %82 : vector<8x128xf32>
    %cst_64 = arith.constant 0.000000e+00 : f32
    %84 = vector.broadcast %cst_64 : f32 to vector<8x128xf32>
    %85 = arith.cmpf ogt, %83, %84 : vector<8x128xf32>
    %cst_65 = arith.constant 2.000000e-01 : f32
    %86 = vector.broadcast %cst_65 : f32 to vector<8x128xf32>
    %87 = arith.mulf %86, %83 : vector<8x128xf32>
    %88 = arith.select %85, %83, %87 : vector<8x128xi1>, vector<8x128xf32>
    %89 = vector.broadcast %26 : vector<1x128xf32> to vector<8x128xf32>
    %90 = arith.mulf %88, %89 : vector<8x128xf32>
    %91 = vector.broadcast %51 : vector<1x128xf32> to vector<8x128xf32>
    %92 = arith.addf %90, %91 : vector<8x128xf32>
    %cst_66 = arith.constant 0.000000e+00 : f32
    %93 = vector.broadcast %cst_66 : f32 to vector<8x128xf32>
    %94 = arith.cmpf ogt, %92, %93 : vector<8x128xf32>
    %cst_67 = arith.constant 2.000000e-01 : f32
    %95 = vector.broadcast %cst_67 : f32 to vector<8x128xf32>
    %96 = arith.mulf %95, %92 : vector<8x128xf32>
    %97 = arith.select %94, %92, %96 : vector<8x128xi1>, vector<8x128xf32>
    %c0_68 = arith.constant 0 : index
    %c0_69 = arith.constant 0 : index
    %c0_70 = arith.constant 0 : index
    %98 = vector.load %arg9[%c0_68, %c0_69, %c0_70] : memref<1x8x128xf32, #tpu.memory_space<vmem>>, vector<1x8x128xf32>
    %99 = vector.shape_cast %98 : vector<1x8x128xf32> to vector<8x128xf32>
    %100 = vector.shape_cast %97 : vector<8x128xf32> to vector<1x8x128xf32>
    tpu.vector_store %arg9[%c0_68, %c0_69, %c0_70], %100 {strides = array<i32>} : memref<1x8x128xf32, #tpu.memory_space<vmem>>, vector<1x8x128xf32>,
    return
  }
  func.func @transform_0(%arg0: i32, %arg1: i32) -> (i32, i32, i32) {
    %c0_i32 = arith.constant 0 : i32
    %c0_i32_0 = arith.constant 0 : i32
    return %arg0, %arg1, %c0_i32 : i32, i32, i32
  }
  func.func @transform_1(%arg0: i32, %arg1: i32) -> (i32, i32, i32) {
    %c0_i32 = arith.constant 0 : i32
    %c0_i32_0 = arith.constant 0 : i32
    %c0_i32_1 = arith.constant 0 : i32
    return %arg0, %c0_i32, %c0_i32_0 : i32, i32, i32
  }
  func.func @transform_2(%arg0: i32, %arg1: i32) -> (i32, i32) {
    %c0_i32 = arith.constant 0 : i32
    %c0_i32_0 = arith.constant 0 : i32
    %c0_i32_1 = arith.constant 0 : i32
    return %c0_i32, %c0_i32_0 : i32, i32
  }
  func.func @transform_3(%arg0: i32, %arg1: i32) -> (i32, i32, i32) {
    %c0_i32 = arith.constant 0 : i32
    %c0_i32_0 = arith.constant 0 : i32
    %c0_i32_1 = arith.constant 0 : i32
    %c0_i32_2 = arith.constant 0 : i32
    return %c0_i32, %c0_i32_0, %c0_i32_1 : i32, i32, i32
  }
  func.func @transform_4(%arg0: i32, %arg1: i32) -> (i32, i32) {
    %c0_i32 = arith.constant 0 : i32
    %c0_i32_0 = arith.constant 0 : i32
    %c0_i32_1 = arith.constant 0 : i32
    return %c0_i32, %c0_i32_0 : i32, i32
  }
  func.func @transform_5(%arg0: i32, %arg1: i32) -> (i32, i32, i32) {
    %c0_i32 = arith.constant 0 : i32
    %c0_i32_0 = arith.constant 0 : i32
    %c0_i32_1 = arith.constant 0 : i32
    %c0_i32_2 = arith.constant 0 : i32
    return %c0_i32, %c0_i32_0, %c0_i32_1 : i32, i32, i32
  }
  func.func @transform_6(%arg0: i32, %arg1: i32) -> (i32, i32) {
    %c0_i32 = arith.constant 0 : i32
    %c0_i32_0 = arith.constant 0 : i32
    %c0_i32_1 = arith.constant 0 : i32
    return %c0_i32, %c0_i32_0 : i32, i32
  }
  func.func @transform_7(%arg0: i32, %arg1: i32) -> (i32, i32, i32) {
    %c0_i32 = arith.constant 0 : i32
    %c0_i32_0 = arith.constant 0 : i32
    return %arg0, %arg1, %c0_i32 : i32, i32, i32
  }
}

</mosaic_0001>

<llo_original>
// kernel: tpu_custom_call.1
$region0: #{tpu_custom_call.1}
  #allocation0 [shape = 'u32[]', space=smem, size = 0x4, offset = 0x4, fixed_abs, tag = 'smem constant byte address 0x4 - core index']
  #allocation1 [shape = 'u32[72,128]{1,0:T(1,128)}', space=vmem, size = 0x9000, scoped, tag = 'internal scratch']
  %s0 = inlined_call_operand.hbm [shape: f32[2,8,32], index: 0, kind: input, shape index: {}]
  %s1 = inlined_call_operand.hbm [shape: f32[2,1,128], index: 1, kind: input, shape index: {}]
  %s2 = inlined_call_operand.hbm [shape: bf16[32,128], index: 2, kind: input, shape index: {}]
  %s3 = inlined_call_operand.hbm [shape: bf16[2,128,128], index: 3, kind: input, shape index: {}]
  %s4 = inlined_call_operand.hbm [shape: f32[3,128], index: 4, kind: input, shape index: {}]
  %s5 = inlined_call_operand.hbm [shape: f32[6,128,128], index: 5, kind: input, shape index: {}]
  %s6 = inlined_call_operand.hbm [shape: f32[6,128], index: 6, kind: input, shape index: {}]
  %s7 = inlined_call_operand.hbm [shape: f32[2,8,128], index: 7, kind: output, shape index: {}]
  %s8 = sld [smem:[#allocation0]]
  $region89: #{tpu_custom_call.1} parent=0
    _
  %s10 = ssub.s32 1, %s8
  %s11 = scalar_select 0, %s10, %s8
  $region1: #{tpu_custom_call.1} parent=0
    #allocation2 [shape = 'u8[8192]{0}', space=vmem, size = 0x2000, scoped, tag = 'input window, operand 0']
    #allocation3 [shape = 's32[2]{0}', space=sflag, size = 0x8, scoped, tag = 'scoped memory for tpu_custom_call.1']
    #allocation4 [shape = 's32[2]{0}', space=sflag, size = 0x8, scoped, tag = 'scoped memory for tpu_custom_call.1']
    #allocation5 [shape = 'u8[1024]{0}', space=vmem, size = 0x400, scoped, tag = 'input window, operand 1']
    #allocation6 [shape = 's32[2]{0}', space=sflag, size = 0x8, scoped, tag = 'scoped memory for tpu_custom_call.1']
    #allocation7 [shape = 'u8[8192]{0}', space=vmem, size = 0x2000, scoped, tag = 'input window, operand 2, single buffered']
    #allocation8 [shape = 'u8[65536]{0}', space=vmem, size = 0x10000, scoped, tag = 'input window, operand 3, single buffered']
    #allocation9 [shape = 's32[1]{0}', space=sflag, size = 0x4, scoped, tag = 'scoped memory for tpu_custom_call.1']
    #allocation10 [shape = 'u8[2048]{0}', space=vmem, size = 0x800, scoped, tag = 'input window, operand 4, single buffered']
    #allocation11 [shape = 'u8[393216]{0}', space=vmem, size = 0x60000, scoped, tag = 'input window, operand 5, single buffered']
    #allocation12 [shape = 's32[1]{0}', space=sflag, size = 0x4, scoped, tag = 'scoped memory for tpu_custom_call.1']
    #allocation13 [shape = 'u8[4096]{0}', space=vmem, size = 0x1000, scoped, tag = 'input window, operand 6, single buffered']
    #allocation14 [shape = 'u8[8192]{0}', space=vmem, size = 0x2000, scoped, tag = 'output window, operand 0']
    %12 = vsyncpa [#allocation3], 0
    %s13 = scalar_lea.sflag [#allocation3], 1
    %14 = vsyncpa %s13, 0
    %15 = vsyncpa [#allocation6], 0
    %s16 = scalar_lea.sflag [#allocation6], 1
    %17 = vsyncpa %s16, 0
    %18 = vsyncpa [#allocation9], 0
    %19 = vsyncpa [#allocation12], 0
    %20 = vsyncpa [#allocation4], 0
    %s21 = scalar_lea.sflag [#allocation4], 1
    %22 = vsyncpa %s21, 0
    loop: start=0, step=1, limit=4
    $region2: #{tpu_custom_call.1} parent=1 // loop_pre_header
      _
    $region3: #{tpu_custom_call.1} parent=1 // loop_header
      %s24 = sphi 0, %s28
      %p25 = scmp.ge.s32.totalorder %s24, 4
      %s31 = sphi 0, %s43
      %s32 = sphi 0, %s39
      %s33 = sphi 0, %s31
      %s34 = sphi 0, %s32
      %s35 = sphi 0, %s33
      %s36 = sphi 0, %s34
      %s48 = sphi 0, %s50
      %s51 = sphi 0, %s48
      %s52 = sphi 0, %s51
      %s68 = sphi 0, %s52
      %s74 = sphi 0, %s76
      %s77 = sphi 0, %s74
      %s78 = sphi 0, %s77
      %s94 = sphi 0, %s78
      %s98 = sphi 0, %s98
      %s100 = sphi 0, %s98
      %s101 = sphi 0, %s100
      %s115 = sphi 0, %s101
      %s119 = sphi 0, %s119
      %s121 = sphi 0, %s119
      %s122 = sphi 0, %s121
      %s136 = sphi 0, %s122
      %s140 = sphi 0, %s140
      %s142 = sphi 0, %s140
      %s143 = sphi 0, %s142
      %s157 = sphi 0, %s143
      %s161 = sphi 0, %s161
      %s163 = sphi 0, %s161
      %s164 = sphi 0, %s163
      %s178 = sphi 0, %s164
      %s182 = sphi 0, %s182
      %s184 = sphi 0, %s182
      %s185 = sphi 0, %s184
      %s199 = sphi 0, %s185
      %s207 = sphi 0, %s209
      %s210 = sphi 0, %s207
      %s211 = sphi 0, %s210
      %s227 = sphi 0, %s211
    $region4: #{tpu_custom_call.1} parent=1 // loop_header_branch
      %27 = sbr.rel (%p25) target = $region8
    $region5: #{tpu_custom_call.1} parent=1 // loop_body
      %s29 = ssub.s32 %s24, 1
      %s30 = ssub.s32 %s24, 2
      %s37 = sadd.s32 1, %s32
      %p38 = scmp.ge.s32.totalorder %s37, 1
      %s39 = scalar_select %p38, 0, %s37
      %s40 = sadd.s32 1, %s31
      %s41 = scalar_select %p38, %s40, %s31
      %p42 = scmp.ge.s32.totalorder %s41, 2
      %s43 = scalar_select %p42, 0, %s41
      %s44 = ssub.s32 %s31, %s43
      %s45 = ssub.s32 %s32, %s39
      %s46 = sor.u32 %s44, %s45
      %p47 = scmp.eq.s32.totalorder %s46, 0
      %s49 = sadd.s32 %s48, 1
      %s50 = scalar_select %p47, %s48, %s49
      %p53 = pneg %p47
      %p54 = scmp.eq.s32.totalorder %s24, 1
      %p55 = por %p53, %p54
      %p56 = scmp.ne.s32.totalorder %s48, %s51
      %p57 = scmp.eq.s32.totalorder %s24, 0
      %p58 = por %p56, %p57
      %p59 = scmp.ne.s32.totalorder %s48, %s51
      %p60 = scmp.eq.s32.totalorder %s29, 1
      %p61 = por %p59, %p60
      %p62 = scmp.ne.s32.totalorder %s51, %s52
      %p63 = scmp.eq.s32.totalorder %s29, 0
      %p64 = por %p62, %p63
      %p65 = scmp.ne.s32.totalorder %s51, %s52
      %p66 = scmp.eq.s32.totalorder %s30, 1
      %p67 = por %p65, %p66
      %p69 = scmp.ne.s32.totalorder %s52, %s68
      %p70 = scmp.eq.s32.totalorder %s30, 0
      %p71 = por %p69, %p70
      %s72 = ssub.s32 %s31, %s43
      %p73 = scmp.eq.s32.totalorder %s72, 0
      %s75 = sadd.s32 %s74, 1
      %s76 = scalar_select %p73, %s74, %s75
      %p79 = pneg %p73
      %p80 = scmp.eq.s32.totalorder %s24, 1
      %p81 = por %p79, %p80
      %p82 = scmp.ne.s32.totalorder %s74, %s77
      %p83 = scmp.eq.s32.totalorder %s24, 0
      %p84 = por %p82, %p83
      %p85 = scmp.ne.s32.totalorder %s74, %s77
      %p86 = scmp.eq.s32.totalorder %s29, 1
      %p87 = por %p85, %p86
      %p88 = scmp.ne.s32.totalorder %s77, %s78
      %p89 = scmp.eq.s32.totalorder %s29, 0
      %p90 = por %p88, %p89
      %p91 = scmp.ne.s32.totalorder %s77, %s78
      %p92 = scmp.eq.s32.totalorder %s30, 1
      %p93 = por %p91, %p92
      %p95 = scmp.ne.s32.totalorder %s78, %s94
      %p96 = scmp.eq.s32.totalorder %s30, 0
      %p97 = por %p95, %p96
      %s99 = sadd.s32 %s98, 1
      %p102 = scmp.eq.s32.totalorder %s24, 1
      %p103 = scmp.ne.s32.totalorder %s98, %s100
      %p104 = scmp.eq.s32.totalorder %s24, 0
      %p105 = por %p103, %p104
      %p106 = scmp.ne.s32.totalorder %s98, %s100
      %p107 = scmp.eq.s32.totalorder %s29, 1
      %p108 = por %p106, %p107
      %p109 = scmp.ne.s32.totalorder %s100, %s101
      %p110 = scmp.eq.s32.totalorder %s29, 0
      %p111 = por %p109, %p110
      %p112 = scmp.ne.s32.totalorder %s100, %s101
      %p113 = scmp.eq.s32.totalorder %s30, 1
      %p114 = por %p112, %p113
      %p116 = scmp.ne.s32.totalorder %s101, %s115
      %p117 = scmp.eq.s32.totalorder %s30, 0
      %p118 = por %p116, %p117
      %s120 = sadd.s32 %s119, 1
      %p123 = scmp.eq.s32.totalorder %s24, 1
      %p124 = scmp.ne.s32.totalorder %s119, %s121
      %p125 = scmp.eq.s32.totalorder %s24, 0
      %p126 = por %p124, %p125
      %p127 = scmp.ne.s32.totalorder %s119, %s121
      %p128 = scmp.eq.s32.totalorder %s29, 1
      %p129 = por %p127, %p128
      %p130 = scmp.ne.s32.totalorder %s121, %s122
      %p131 = scmp.eq.s32.totalorder %s29, 0
      %p132 = por %p130, %p131
      %p133 = scmp.ne.s32.totalorder %s121, %s122
      %p134 = scmp.eq.s32.totalorder %s30, 1
      %p135 = por %p133, %p134
      %p137 = scmp.ne.s32.totalorder %s122, %s136
      %p138 = scmp.eq.s32.totalorder %s30, 0
      %p139 = por %p137, %p138
      %s141 = sadd.s32 %s140, 1
      %p144 = scmp.eq.s32.totalorder %s24, 1
      %p145 = scmp.ne.s32.totalorder %s140, %s142
      %p146 = scmp.eq.s32.totalorder %s24, 0
      %p147 = por %p145, %p146
      %p148 = scmp.ne.s32.totalorder %s140, %s142
      %p149 = scmp.eq.s32.totalorder %s29, 1
      %p150 = por %p148, %p149
      %p151 = scmp.ne.s32.totalorder %s142, %s143
      %p152 = scmp.eq.s32.totalorder %s29, 0
      %p153 = por %p151, %p152
      %p154 = scmp.ne.s32.totalorder %s142, %s143
      %p155 = scmp.eq.s32.totalorder %s30, 1
      %p156 = por %p154, %p155
      %p158 = scmp.ne.s32.totalorder %s143, %s157
      %p159 = scmp.eq.s32.totalorder %s30, 0
      %p160 = por %p158, %p159
      %s162 = sadd.s32 %s161, 1
      %p165 = scmp.eq.s32.totalorder %s24, 1
      %p166 = scmp.ne.s32.totalorder %s161, %s163
      %p167 = scmp.eq.s32.totalorder %s24, 0
      %p168 = por %p166, %p167
      %p169 = scmp.ne.s32.totalorder %s161, %s163
      %p170 = scmp.eq.s32.totalorder %s29, 1
      %p171 = por %p169, %p170
      %p172 = scmp.ne.s32.totalorder %s163, %s164
      %p173 = scmp.eq.s32.totalorder %s29, 0
      %p174 = por %p172, %p173
      %p175 = scmp.ne.s32.totalorder %s163, %s164
      %p176 = scmp.eq.s32.totalorder %s30, 1
      %p177 = por %p175, %p176
      %p179 = scmp.ne.s32.totalorder %s164, %s178
      %p180 = scmp.eq.s32.totalorder %s30, 0
      %p181 = por %p179, %p180
      %s183 = sadd.s32 %s182, 1
      %p186 = scmp.eq.s32.totalorder %s24, 1
      %p187 = scmp.ne.s32.totalorder %s182, %s184
      %p188 = scmp.eq.s32.totalorder %s24, 0
      %p189 = por %p187, %p188
      %p190 = scmp.ne.s32.totalorder %s182, %s184
      %p191 = scmp.eq.s32.totalorder %s29, 1
      %p192 = por %p190, %p191
      %p193 = scmp.ne.s32.totalorder %s184, %s185
      %p194 = scmp.eq.s32.totalorder %s29, 0
      %p195 = por %p193, %p194
      %p196 = scmp.ne.s32.totalorder %s184, %s185
      %p197 = scmp.eq.s32.totalorder %s30, 1
      %p198 = por %p196, %p197
      %p200 = scmp.ne.s32.totalorder %s185, %s199
      %p201 = scmp.eq.s32.totalorder %s30, 0
      %p202 = por %p200, %p201
      %s203 = ssub.s32 %s31, %s43
      %s204 = ssub.s32 %s32, %s39
      %s205 = sor.u32 %s203, %s204
      %p206 = scmp.eq.s32.totalorder %s205, 0
      %s208 = sadd.s32 %s207, 1
      %s209 = scalar_select %p206, %s207, %s208
      %p212 = pneg %p206
      %p213 = scmp.eq.s32.totalorder %s24, 1
      %p214 = por %p212, %p213
      %p215 = scmp.ne.s32.totalorder %s207, %s210
      %p216 = scmp.eq.s32.totalorder %s24, 0
      %p217 = por %p215, %p216
      %p218 = scmp.ne.s32.totalorder %s207, %s210
      %p219 = scmp.eq.s32.totalorder %s29, 1
      %p220 = por %p218, %p219
      %p221 = scmp.ne.s32.totalorder %s210, %s211
      %p222 = scmp.eq.s32.totalorder %s29, 0
      %p223 = por %p221, %p222
      %p224 = scmp.ne.s32.totalorder %s210, %s211
      %p225 = scmp.eq.s32.totalorder %s30, 1
      %p226 = por %p224, %p225
      %p228 = scmp.ne.s32.totalorder %s211, %s227
      %p229 = scmp.eq.s32.totalorder %s30, 0
      %p230 = por %p228, %p229
      %p231 = scmp.le.s32.totalorder 1, %s24
      %p232 = scmp.lt.s32.totalorder %s24, 3
      %p233 = pnand %p231, %p232
      %p234 = pneg %p233
      // Predicated region
      $region9: #{tpu_custom_call.1} parent=5 // pred_check
        _
      $region10: #{tpu_custom_call.1} parent=5 // pred_check_branch
        %236 = sbr.rel (%p233) target = $region12
      $region11: #{tpu_custom_call.1} parent=5 // pred_region
        %s237 = ssub.s32 %s24, 1
        // Predicated region
        $region13: #{tpu_custom_call.1} parent=11 // pred_check
          %p238 = pneg %p111
        $region14: #{tpu_custom_call.1} parent=11 // pred_check_branch
          %240 = sbr.rel (%p238) target = $region16
        $region15: #{tpu_custom_call.1} parent=11 // pred_region
          %242 = vsyncadd [#allocation6], 0
          %s243 = sshll.u32 %s2, 4
          %s244 = int_to_ptr.hbm [resolvable:$true] %s243
          %s245 = sshll.u32 [#allocation7], 4
          %s246 = int_to_ptr.vmem [resolvable:$true] %s245
          %251 = dma.hbm_to_vmem [thread:$0]  %s244, 256, %s246, [#allocation6], 64, 64, 4
        $region16: #{tpu_custom_call.1} parent=11 // pred_fallthru
          _
        // Predicated region
        $region17: #{tpu_custom_call.1} parent=11 // pred_check
          %p252 = pneg %p132
        $region18: #{tpu_custom_call.1} parent=11 // pred_check_branch
          %254 = sbr.rel (%p252) target = $region20
        $region19: #{tpu_custom_call.1} parent=11 // pred_region
          %256 = vsyncadd [#allocation9], 0
          %s257 = sshll.u32 %s3, 4
          %s258 = int_to_ptr.hbm [resolvable:$true] %s257
          %s259 = sshll.u32 [#allocation8], 4
          %s260 = int_to_ptr.vmem [resolvable:$true] %s259
          %265 = dma.hbm_to_vmem [thread:$0]  %s258, 2048, %s260, [#allocation9], 64, 64, 4
        $region20: #{tpu_custom_call.1} parent=11 // pred_fallthru
          _
        // Predicated region
        $region21: #{tpu_custom_call.1} parent=11 // pred_check
          %p266 = pneg %p153
        $region22: #{tpu_custom_call.1} parent=11 // pred_check_branch
          %268 = sbr.rel (%p266) target = $region24
        $region23: #{tpu_custom_call.1} parent=11 // pred_region
          %270 = vsyncadd [#allocation9], 0
          %s272 = sshll.u32 %s4, 4
          %s273 = int_to_ptr.hbm [resolvable:$true] %s272
          %s274 = sshll.u32 [#allocation10], 4
          %s275 = int_to_ptr.vmem [resolvable:$true] %s274
          %277 = dma.hbm_to_vmem [thread:$0]  %s273, 64, %s275, [#allocation9]
        $region24: #{tpu_custom_call.1} parent=11 // pred_fallthru
          _
        // Predicated region
        $region25: #{tpu_custom_call.1} parent=11 // pred_check
          %p278 = pneg %p174
        $region26: #{tpu_custom_call.1} parent=11 // pred_check_branch
          %280 = sbr.rel (%p278) target = $region28
        $region27: #{tpu_custom_call.1} parent=11 // pred_region
          %282 = vsyncadd [#allocation12], 0
          %s283 = sshll.u32 %s5, 4
          %s284 = int_to_ptr.hbm [resolvable:$true] %s283
          %s285 = sshll.u32 [#allocation11], 4
          %s286 = int_to_ptr.vmem [resolvable:$true] %s285
          %291 = dma.hbm_to_vmem [thread:$0]  %s284, 12288, %s286, [#allocation12], 128, 128, 8
        $region28: #{tpu_custom_call.1} parent=11 // pred_fallthru
          _
        // Predicated region
        $region29: #{tpu_custom_call.1} parent=11 // pred_check
          %p292 = pneg %p195
        $region30: #{tpu_custom_call.1} parent=11 // pred_check_branch
          %294 = sbr.rel (%p292) target = $region32
        $region31: #{tpu_custom_call.1} parent=11 // pred_region
          %296 = vsyncadd [#allocation12], 0
          %s298 = sshll.u32 %s6, 4
          %s299 = int_to_ptr.hbm [resolvable:$true] %s298
          %s300 = sshll.u32 [#allocation13], 4
          %s301 = int_to_ptr.vmem [resolvable:$true] %s300
          %303 = dma.hbm_to_vmem [thread:$0]  %s299, 128, %s301, [#allocation12]
        $region32: #{tpu_custom_call.1} parent=11 // pred_fallthru
          _
      $region12: #{tpu_custom_call.1} parent=5 // pred_fallthru
        _
      %p304 = scmp.lt.s32.totalorder %s24, 2
      // Predicated region
      $region33: #{tpu_custom_call.1} parent=5 // pred_check
        %p305 = pneg %p304
      $region34: #{tpu_custom_call.1} parent=5 // pred_check_branch
        %307 = sbr.rel (%p305) target = $region36
      $region35: #{tpu_custom_call.1} parent=5 // pred_region
        // Predicated region
        $region37: #{tpu_custom_call.1} parent=35 // pred_check
          %p308 = pneg %p58
        $region38: #{tpu_custom_call.1} parent=35 // pred_check_branch
          %310 = sbr.rel (%p308) target = $region40
        $region39: #{tpu_custom_call.1} parent=35 // pred_region
          %s311 = sand.u32 %s48, 1
          %s312 = scalar_lea.sflag [#allocation3], %s311
          %s313 = sand.u32 %s48, 1
          %s314 = smul.addr %s313, 8
          %s315 = scalar_lea.vmem [#allocation2], %s314
          %317 = vsyncadd %s312, 0
          %s318 = sadd.s32 %s32, %s31
          %s319 = smul.addr %s318, 8
          %s320 = scalar_lea.hbm %s0, %s319
          %s322 = sshll.u32 %s320, 4
          %s323 = int_to_ptr.hbm [resolvable:$true] %s322
          %s324 = sshll.u32 %s315, 4
          %s325 = int_to_ptr.vmem [resolvable:$true] %s324
          %327 = dma.hbm_to_vmem [thread:$0]  %s323, 128, %s325, %s312
        $region40: #{tpu_custom_call.1} parent=35 // pred_fallthru
          _
        // Predicated region
        $region41: #{tpu_custom_call.1} parent=35 // pred_check
          %p328 = pneg %p84
        $region42: #{tpu_custom_call.1} parent=35 // pred_check_branch
          %330 = sbr.rel (%p328) target = $region44
        $region43: #{tpu_custom_call.1} parent=35 // pred_region
          %s331 = sand.u32 %s24, 1
          %s332 = scalar_lea.sflag [#allocation6], %s331
          %s333 = sand.u32 %s74, 1
          %s334 = scalar_lea.vmem [#allocation5], %s333
          %336 = vsyncadd %s332, 0
          %s337 = scalar_lea.hbm %s1, %s31
          %s339 = sshll.u32 %s337, 4
          %s340 = int_to_ptr.hbm [resolvable:$true] %s339
          %s341 = sshll.u32 %s334, 4
          %s342 = int_to_ptr.vmem [resolvable:$true] %s341
          %344 = dma.hbm_to_vmem [thread:$0]  %s340, 16, %s342, %s332
        $region44: #{tpu_custom_call.1} parent=35 // pred_fallthru
          _
      $region36: #{tpu_custom_call.1} parent=5 // pred_fallthru
        _
      %p345 = scmp.le.s32.totalorder 1, %s24
      %p346 = scmp.lt.s32.totalorder %s24, 3
      %p347 = pnand %p345, %p346
      %p348 = pneg %p347
      // Predicated region
      $region45: #{tpu_custom_call.1} parent=5 // pred_check
        _
      $region46: #{tpu_custom_call.1} parent=5 // pred_check_branch
        %350 = sbr.rel (%p347) target = $region48
      $region47: #{tpu_custom_call.1} parent=5 // pred_region
        %s351 = ssub.s32 %s24, 1
        %s352 = sand.u32 %s51, 1
        %s353 = scalar_lea.sflag [#allocation3], %s352
        %s354 = sand.u32 %s51, 1
        %s355 = smul.addr %s354, 8
        %s356 = scalar_lea.vmem [#allocation2], %s355
        // Predicated region
        $region49: #{tpu_custom_call.1} parent=47 // pred_check
          %p357 = pneg %p64
        $region50: #{tpu_custom_call.1} parent=47 // pred_check_branch
          %359 = sbr.rel (%p357) target = $region52
        $region51: #{tpu_custom_call.1} parent=47 // pred_region
          %361 = dma.done %s353, 128
        $region52: #{tpu_custom_call.1} parent=47 // pred_fallthru
          _
        %s362 = sand.u32 %s29, 1
        %s363 = scalar_lea.sflag [#allocation6], %s362
        %s364 = sand.u32 %s77, 1
        %s365 = scalar_lea.vmem [#allocation5], %s364
        // Predicated region
        $region53: #{tpu_custom_call.1} parent=47 // pred_check
          %p366 = pneg %p90
        $region54: #{tpu_custom_call.1} parent=47 // pred_check_branch
          %368 = sbr.rel (%p366) target = $region56
        $region55: #{tpu_custom_call.1} parent=47 // pred_region
          %370 = dma.done %s363, 16
        $region56: #{tpu_custom_call.1} parent=47 // pred_fallthru
          _
        // Predicated region
        $region57: #{tpu_custom_call.1} parent=47 // pred_check
          %p371 = pneg %p111
        $region58: #{tpu_custom_call.1} parent=47 // pred_check_branch
          %373 = sbr.rel (%p371) target = $region60
        $region59: #{tpu_custom_call.1} parent=47 // pred_region
          %375 = dma.done [#allocation6], 256
        $region60: #{tpu_custom_call.1} parent=47 // pred_fallthru
          _
        // Predicated region
        $region61: #{tpu_custom_call.1} parent=47 // pred_check
          %p376 = pneg %p132
        $region62: #{tpu_custom_call.1} parent=47 // pred_check_branch
          %378 = sbr.rel (%p376) target = $region64
        $region63: #{tpu_custom_call.1} parent=47 // pred_region
          %380 = dma.done [#allocation9], 2048
        $region64: #{tpu_custom_call.1} parent=47 // pred_fallthru
          _
        // Predicated region
        $region65: #{tpu_custom_call.1} parent=47 // pred_check
          %p381 = pneg %p153
        $region66: #{tpu_custom_call.1} parent=47 // pred_check_branch
          %383 = sbr.rel (%p381) target = $region68
        $region67: #{tpu_custom_call.1} parent=47 // pred_region
          %385 = dma.done [#allocation9], 64
        $region68: #{tpu_custom_call.1} parent=47 // pred_fallthru
          _
        // Predicated region
        $region69: #{tpu_custom_call.1} parent=47 // pred_check
          %p386 = pneg %p174
        $region70: #{tpu_custom_call.1} parent=47 // pred_check_branch
          %388 = sbr.rel (%p386) target = $region72
        $region71: #{tpu_custom_call.1} parent=47 // pred_region
          %390 = dma.done [#allocation12], 12288
        $region72: #{tpu_custom_call.1} parent=47 // pred_fallthru
          _
        // Predicated region
        $region73: #{tpu_custom_call.1} parent=47 // pred_check
          %p391 = pneg %p195
        $region74: #{tpu_custom_call.1} parent=47 // pred_check_branch
          %393 = sbr.rel (%p391) target = $region76
        $region75: #{tpu_custom_call.1} parent=47 // pred_region
          %395 = dma.done [#allocation12], 128
        $region76: #{tpu_custom_call.1} parent=47 // pred_fallthru
          _
        %s396 = sand.u32 %s51, 1
        %s397 = scalar_lea.sflag [#allocation3], %s396
        %s398 = sand.u32 %s51, 1
        %s399 = smul.addr %s398, 8
        %s400 = scalar_lea.vmem [#allocation2], %s399
        %p401 = pneg %p64
        %p402 = pneg %p61
        %s403 = sand.u32 %s29, 1
        %s404 = scalar_lea.sflag [#allocation6], %s403
        %s405 = sand.u32 %s77, 1
        %s406 = scalar_lea.vmem [#allocation5], %s405
        %p407 = pneg %p90
        %p408 = pneg %p87
        %p409 = pneg %p111
        %p410 = pneg %p108
        %p411 = pneg %p132
        %p412 = pneg %p129
        %p413 = pneg %p153
        %p414 = pneg %p150
        %p415 = pneg %p174
        %p416 = pneg %p171
        %p417 = pneg %p195
        %p418 = pneg %p192
        %p419 = pneg %p223
        %p420 = pneg %p220
        %s421 = sand.u32 %s210, 1
        %s422 = scalar_lea.sflag [#allocation4], %s421
        %s423 = sand.u32 %s210, 1
        %s424 = smul.addr %s423, 8
        %s425 = scalar_lea.vmem [#allocation14], %s424
        %v427 = vld [vmem:[%s365] sm:$0x1]
        %v428 = vld [vmem:[#allocation11] sm:$0xff]
        %v429 = vld [vmem:[#allocation11 + $0x8] sm:$0xff]
        %v430 = vld [vmem:[#allocation11 + $0x10] sm:$0xff]
        %v431 = vld [vmem:[#allocation11 + $0x18] sm:$0xff]
        %v432 = vld [vmem:[#allocation11 + $0x20] sm:$0xff]
        %v433 = vld [vmem:[#allocation11 + $0x28] sm:$0xff]
        %v434 = vld [vmem:[#allocation11 + $0x30] sm:$0xff]
        %v435 = vld [vmem:[#allocation11 + $0x38] sm:$0xff]
        %v436 = vld [vmem:[#allocation11 + $0x40] sm:$0xff]
        %v437 = vld [vmem:[#allocation11 + $0x48] sm:$0xff]
        %v438 = vld [vmem:[#allocation11 + $0x50] sm:$0xff]
        %v439 = vld [vmem:[#allocation11 + $0x58] sm:$0xff]
        %v440 = vld [vmem:[#allocation11 + $0x60] sm:$0xff]
        %v441 = vld [vmem:[#allocation11 + $0x68] sm:$0xff]
        %v442 = vld [vmem:[#allocation11 + $0x70] sm:$0xff]
        %v443 = vld [vmem:[#allocation11 + $0x78] sm:$0xff]
        %v444 = vld [vmem:[#allocation13] sm:$0x1]
        %445 = vmatpush.msra.mxu0 %v443
        %446 = vmatpush.msra.mxu0 %v442
        %447 = vmatpush.msra.mxu0 %v441
        %448 = vmatpush.msra.mxu0 %v440
        %449 = vmatpush.msra.mxu0 %v439
        %450 = vmatpush.msra.mxu0 %v438
        %451 = vmatpush.msra.mxu0 %v437
        %452 = vmatpush.msra.mxu0 %v436
        %453 = vmatpush.msra.mxu0 %v435
        %454 = vmatpush.msra.mxu0 %v434
        %455 = vmatpush.msra.mxu0 %v433
        %456 = vmatpush.msra.mxu0 %v432
        %457 = vmatpush.msra.mxu0 %v431
        %458 = vmatpush.msra.mxu0 %v430
        %459 = vmatpush.msra.mxu0 %v429
        %460 = vmatpush.msra.mxu0 %v428
        %461 = vmatmul.f32.gmra.mxu0 %v427
        %v462 = vpop.f32.mrf.mxu0
        %v463 = vadd.f32 %v444, %v462
        %464 = vdwg.mxu0
        %vm465 = vcmp.gt.f32.partialorder %v463, 0.0
        %v466 = vmul.f32 %v463, 0.2
        %v467 = vsel %vm465, %v463, %v466
        %s468 = scalar_lea.vmem [#allocation11], 128
        %v469 = vld [vmem:[%s468] sm:$0xff]
        %v470 = vld [vmem:[%s468 + $0x8] sm:$0xff]
        %v471 = vld [vmem:[%s468 + $0x10] sm:$0xff]
        %v472 = vld [vmem:[%s468 + $0x18] sm:$0xff]
        %v473 = vld [vmem:[%s468 + $0x20] sm:$0xff]
        %v474 = vld [vmem:[%s468 + $0x28] sm:$0xff]
        %v475 = vld [vmem:[%s468 + $0x30] sm:$0xff]
        %v476 = vld [vmem:[%s468 + $0x38] sm:$0xff]
        %v477 = vld [vmem:[%s468 + $0x40] sm:$0xff]
        %v478 = vld [vmem:[%s468 + $0x48] sm:$0xff]
        %v479 = vld [vmem:[%s468 + $0x50] sm:$0xff]
        %v480 = vld [vmem:[%s468 + $0x58] sm:$0xff]
        %v481 = vld [vmem:[%s468 + $0x60] sm:$0xff]
        %v482 = vld [vmem:[%s468 + $0x68] sm:$0xff]
        %v483 = vld [vmem:[%s468 + $0x70] sm:$0xff]
        %v484 = vld [vmem:[%s468 + $0x78] sm:$0xff]
        %v485 = vld [vmem:[#allocation13 + $0x1] sm:$0x1]
        %486 = vmatpush.msra.mxu0 %v484
        %487 = vmatpush.msra.mxu0 %v483
        %488 = vmatpush.msra.mxu0 %v482
        %489 = vmatpush.msra.mxu0 %v481
        %490 = vmatpush.msra.mxu0 %v480
        %491 = vmatpush.msra.mxu0 %v479
        %492 = vmatpush.msra.mxu0 %v478
        %493 = vmatpush.msra.mxu0 %v477
        %494 = vmatpush.msra.mxu0 %v476
        %495 = vmatpush.msra.mxu0 %v475
        %496 = vmatpush.msra.mxu0 %v474
        %497 = vmatpush.msra.mxu0 %v473
        %498 = vmatpush.msra.mxu0 %v472
        %499 = vmatpush.msra.mxu0 %v471
        %500 = vmatpush.msra.mxu0 %v470
        %501 = vmatpush.msra.mxu0 %v469
        %502 = vmatmul.f32.gmra.mxu0 %v467
        %v503 = vpop.f32.mrf.mxu0
        %v504 = vadd.f32 %v485, %v503
        %505 = vdwg.mxu0
        %vm506 = vcmp.gt.f32.partialorder %v504, 0.0
        %v507 = vmul.f32 %v504, 0.2
        %v508 = vsel %vm506, %v504, %v507
        %s509 = scalar_lea.vmem [#allocation11], 256
        %v510 = vld [vmem:[%s509] sm:$0xff]
        %v511 = vld [vmem:[%s509 + $0x8] sm:$0xff]
        %v512 = vld [vmem:[%s509 + $0x10] sm:$0xff]
        %v513 = vld [vmem:[%s509 + $0x18] sm:$0xff]
        %v514 = vld [vmem:[%s509 + $0x20] sm:$0xff]
        %v515 = vld [vmem:[%s509 + $0x28] sm:$0xff]
        %v516 = vld [vmem:[%s509 + $0x30] sm:$0xff]
        %v517 = vld [vmem:[%s509 + $0x38] sm:$0xff]
        %v518 = vld [vmem:[%s509 + $0x40] sm:$0xff]
        %v519 = vld [vmem:[%s509 + $0x48] sm:$0xff]
        %v520 = vld [vmem:[%s509 + $0x50] sm:$0xff]
        %v521 = vld [vmem:[%s509 + $0x58] sm:$0xff]
        %v522 = vld [vmem:[%s509 + $0x60] sm:$0xff]
        %v523 = vld [vmem:[%s509 + $0x68] sm:$0xff]
        %v524 = vld [vmem:[%s509 + $0x70] sm:$0xff]
        %v525 = vld [vmem:[%s509 + $0x78] sm:$0xff]
        %v526 = vld [vmem:[#allocation13 + $0x2] sm:$0x1]
        %527 = vmatpush.msra.mxu0 %v525
        %528 = vmatpush.msra.mxu0 %v524
        %529 = vmatpush.msra.mxu0 %v523
        %530 = vmatpush.msra.mxu0 %v522
        %531 = vmatpush.msra.mxu0 %v521
        %532 = vmatpush.msra.mxu0 %v520
        %533 = vmatpush.msra.mxu0 %v519
        %534 = vmatpush.msra.mxu0 %v518
        %535 = vmatpush.msra.mxu0 %v517
        %536 = vmatpush.msra.mxu0 %v516
        %537 = vmatpush.msra.mxu0 %v515
        %538 = vmatpush.msra.mxu0 %v514
        %539 = vmatpush.msra.mxu0 %v513
        %540 = vmatpush.msra.mxu0 %v512
        %541 = vmatpush.msra.mxu0 %v511
        %542 = vmatpush.msra.mxu0 %v510
        %543 = vmatmul.f32.gmra.mxu0 %v508
        %v544 = vpop.f32.mrf.mxu0
        %v545 = vadd.f32 %v526, %v544
        %546 = vdwg.mxu0
        %s547 = scalar_lea.vmem [#allocation11], 384
        %v548 = vld [vmem:[%s547] sm:$0xff]
        %v549 = vld [vmem:[%s547 + $0x8] sm:$0xff]
        %v550 = vld [vmem:[%s547 + $0x10] sm:$0xff]
        %v551 = vld [vmem:[%s547 + $0x18] sm:$0xff]
        %v552 = vld [vmem:[%s547 + $0x20] sm:$0xff]
        %v553 = vld [vmem:[%s547 + $0x28] sm:$0xff]
        %v554 = vld [vmem:[%s547 + $0x30] sm:$0xff]
        %v555 = vld [vmem:[%s547 + $0x38] sm:$0xff]
        %v556 = vld [vmem:[%s547 + $0x40] sm:$0xff]
        %v557 = vld [vmem:[%s547 + $0x48] sm:$0xff]
        %v558 = vld [vmem:[%s547 + $0x50] sm:$0xff]
        %v559 = vld [vmem:[%s547 + $0x58] sm:$0xff]
        %v560 = vld [vmem:[%s547 + $0x60] sm:$0xff]
        %v561 = vld [vmem:[%s547 + $0x68] sm:$0xff]
        %v562 = vld [vmem:[%s547 + $0x70] sm:$0xff]
        %v563 = vld [vmem:[%s547 + $0x78] sm:$0xff]
        %v564 = vld [vmem:[#allocation13 + $0x3] sm:$0x1]
        %565 = vmatpush.msra.mxu0 %v563
        %566 = vmatpush.msra.mxu0 %v562
        %567 = vmatpush.msra.mxu0 %v561
        %568 = vmatpush.msra.mxu0 %v560
        %569 = vmatpush.msra.mxu0 %v559
        %570 = vmatpush.msra.mxu0 %v558
        %571 = vmatpush.msra.mxu0 %v557
        %572 = vmatpush.msra.mxu0 %v556
        %573 = vmatpush.msra.mxu0 %v555
        %574 = vmatpush.msra.mxu0 %v554
        %575 = vmatpush.msra.mxu0 %v553
        %576 = vmatpush.msra.mxu0 %v552
        %577 = vmatpush.msra.mxu0 %v551
        %578 = vmatpush.msra.mxu0 %v550
        %579 = vmatpush.msra.mxu0 %v549
        %580 = vmatpush.msra.mxu0 %v548
        %581 = vmatmul.f32.gmra.mxu0 %v427
        %v582 = vpop.f32.mrf.mxu0
        %v583 = vadd.f32 %v564, %v582
        %584 = vdwg.mxu0
        %vm585 = vcmp.gt.f32.partialorder %v583, 0.0
        %v586 = vmul.f32 %v583, 0.2
        %v587 = vsel %vm585, %v583, %v586
        %s588 = scalar_lea.vmem [#allocation11], 512
        %v589 = vld [vmem:[%s588] sm:$0xff]
        %v590 = vld [vmem:[%s588 + $0x8] sm:$0xff]
        %v591 = vld [vmem:[%s588 + $0x10] sm:$0xff]
        %v592 = vld [vmem:[%s588 + $0x18] sm:$0xff]
        %v593 = vld [vmem:[%s588 + $0x20] sm:$0xff]
        %v594 = vld [vmem:[%s588 + $0x28] sm:$0xff]
        %v595 = vld [vmem:[%s588 + $0x30] sm:$0xff]
        %v596 = vld [vmem:[%s588 + $0x38] sm:$0xff]
        %v597 = vld [vmem:[%s588 + $0x40] sm:$0xff]
        %v598 = vld [vmem:[%s588 + $0x48] sm:$0xff]
        %v599 = vld [vmem:[%s588 + $0x50] sm:$0xff]
        %v600 = vld [vmem:[%s588 + $0x58] sm:$0xff]
        %v601 = vld [vmem:[%s588 + $0x60] sm:$0xff]
        %v602 = vld [vmem:[%s588 + $0x68] sm:$0xff]
        %v603 = vld [vmem:[%s588 + $0x70] sm:$0xff]
        %v604 = vld [vmem:[%s588 + $0x78] sm:$0xff]
        %v605 = vld [vmem:[#allocation13 + $0x4] sm:$0x1]
        %606 = vmatpush.msra.mxu0 %v604
        %607 = vmatpush.msra.mxu0 %v603
        %608 = vmatpush.msra.mxu0 %v602
        %609 = vmatpush.msra.mxu0 %v601
        %610 = vmatpush.msra.mxu0 %v600
        %611 = vmatpush.msra.mxu0 %v599
        %612 = vmatpush.msra.mxu0 %v598
        %613 = vmatpush.msra.mxu0 %v597
        %614 = vmatpush.msra.mxu0 %v596
        %615 = vmatpush.msra.mxu0 %v595
        %616 = vmatpush.msra.mxu0 %v594
        %617 = vmatpush.msra.mxu0 %v593
        %618 = vmatpush.msra.mxu0 %v592
        %619 = vmatpush.msra.mxu0 %v591
        %620 = vmatpush.msra.mxu0 %v590
        %621 = vmatpush.msra.mxu0 %v589
        %622 = vmatmul.f32.gmra.mxu0 %v587
        %v623 = vpop.f32.mrf.mxu0
        %v624 = vadd.f32 %v605, %v623
        %625 = vdwg.mxu0
        %vm626 = vcmp.gt.f32.partialorder %v624, 0.0
        %v627 = vmul.f32 %v624, 0.2
        %v628 = vsel %vm626, %v624, %v627
        %s629 = scalar_lea.vmem [#allocation11], 640
        %v630 = vld [vmem:[%s629] sm:$0xff]
        %v631 = vld [vmem:[%s629 + $0x8] sm:$0xff]
        %v632 = vld [vmem:[%s629 + $0x10] sm:$0xff]
        %v633 = vld [vmem:[%s629 + $0x18] sm:$0xff]
        %v634 = vld [vmem:[%s629 + $0x20] sm:$0xff]
        %v635 = vld [vmem:[%s629 + $0x28] sm:$0xff]
        %v636 = vld [vmem:[%s629 + $0x30] sm:$0xff]
        %v637 = vld [vmem:[%s629 + $0x38] sm:$0xff]
        %v638 = vld [vmem:[%s629 + $0x40] sm:$0xff]
        %v639 = vld [vmem:[%s629 + $0x48] sm:$0xff]
        %v640 = vld [vmem:[%s629 + $0x50] sm:$0xff]
        %v641 = vld [vmem:[%s629 + $0x58] sm:$0xff]
        %v642 = vld [vmem:[%s629 + $0x60] sm:$0xff]
        %v643 = vld [vmem:[%s629 + $0x68] sm:$0xff]
        %v644 = vld [vmem:[%s629 + $0x70] sm:$0xff]
        %v645 = vld [vmem:[%s629 + $0x78] sm:$0xff]
        %v646 = vld [vmem:[#allocation13 + $0x5] sm:$0x1]
        %647 = vmatpush.msra.mxu0 %v645
        %648 = vmatpush.msra.mxu0 %v644
        %649 = vmatpush.msra.mxu0 %v643
        %650 = vmatpush.msra.mxu0 %v642
        %651 = vmatpush.msra.mxu0 %v641
        %652 = vmatpush.msra.mxu0 %v640
        %653 = vmatpush.msra.mxu0 %v639
        %654 = vmatpush.msra.mxu0 %v638
        %655 = vmatpush.msra.mxu0 %v637
        %656 = vmatpush.msra.mxu0 %v636
        %657 = vmatpush.msra.mxu0 %v635
        %658 = vmatpush.msra.mxu0 %v634
        %659 = vmatpush.msra.mxu0 %v633
        %660 = vmatpush.msra.mxu0 %v632
        %661 = vmatpush.msra.mxu0 %v631
        %662 = vmatpush.msra.mxu0 %v630
        %663 = vmatmul.f32.gmra.mxu0 %v628
        %v664 = vpop.f32.mrf.mxu0
        %v665 = vadd.f32 %v646, %v664
        %666 = vdwg.mxu0
        %v667 = vld [vmem:[%s356] sm:$0xff]
        %v668 = vpack.c.bf16 %v667, %v667
        %v669 = vld [vmem:[#allocation7] sm:$0xf]
        %v670 = vld [vmem:[#allocation7 + $0x4] sm:$0xf]
        %v671 = vld [vmem:[#allocation7 + $0x8] sm:$0xf]
        %v672 = vld [vmem:[#allocation7 + $0xc] sm:$0xf]
        %v673 = vld [vmem:[#allocation10] sm:$0x1]
        %v674 = vperm.slane %v673, 0
        %v679 = vunpack.c.l.b16 %v669
        %v680 = vunpack.c.l.b16 %v670
        %v681 = vunpack.c.l.b16 %v671
        %v682 = vunpack.c.l.b16 %v672
        %v683 = vpack.c.b16 %v680, %v679
        %v684 = vpack.c.b16 %v682, %v681
        %vm687 = vcmask 261120
        %v689 = vsel %vm687, %v668, 0
        %691 = vmatpush.bf16.msra.mxu0 0
        %692 = vmatpush.bf16.msra.mxu0 0
        %693 = vmatpush.bf16.msra.mxu0 0
        %694 = vmatpush.bf16.msra.mxu0 0
        %695 = vmatpush.bf16.msra.mxu0 0
        %696 = vmatpush.bf16.msra.mxu0 0
        %697 = vmatpush.bf16.msra.mxu0 %v684
        %698 = vmatpush.bf16.msra.mxu0 %v683
        %699 = vmatmul.bf16.gmra.mxu0 %v689
        %v700 = vpop.f32.mrf.mxu0
        %v701 = vadd.f32 %v674, %v700
        %v702 = vpop.f32.mrf.mxu0
        %703 = vdwg.mxu0
        %vm704 = vcmp.gt.f32.partialorder %v701, 0.0
        %v705 = vmul.f32 %v701, 0.2
        %v706 = vsel %vm704, %v701, %v705
        %v707 = vpack.c.bf16 %v706, %v706
        %v708 = vld [vmem:[#allocation8] sm:$0xf]
        %v709 = vld [vmem:[#allocation8 + $0x4] sm:$0xf]
        %v710 = vld [vmem:[#allocation8 + $0x8] sm:$0xf]
        %v711 = vld [vmem:[#allocation8 + $0xc] sm:$0xf]
        %v712 = vld [vmem:[#allocation8 + $0x10] sm:$0xf]
        %v713 = vld [vmem:[#allocation8 + $0x14] sm:$0xf]
        %v714 = vld [vmem:[#allocation8 + $0x18] sm:$0xf]
        %v715 = vld [vmem:[#allocation8 + $0x1c] sm:$0xf]
        %v716 = vld [vmem:[#allocation8 + $0x20] sm:$0xf]
        %v717 = vld [vmem:[#allocation8 + $0x24] sm:$0xf]
        %v718 = vld [vmem:[#allocation8 + $0x28] sm:$0xf]
        %v719 = vld [vmem:[#allocation8 + $0x2c] sm:$0xf]
        %v720 = vld [vmem:[#allocation8 + $0x30] sm:$0xf]
        %v721 = vld [vmem:[#allocation8 + $0x34] sm:$0xf]
        %v722 = vld [vmem:[#allocation8 + $0x38] sm:$0xf]
        %v723 = vld [vmem:[#allocation8 + $0x3c] sm:$0xf]
        %v724 = vld [vmem:[#allocation10 + $0x1] sm:$0x1]
        %v725 = vperm.slane %v724, 0
        %v742 = vunpack.c.l.b16 %v708
        %v743 = vunpack.c.l.b16 %v709
        %v744 = vunpack.c.l.b16 %v710
        %v745 = vunpack.c.l.b16 %v711
        %v746 = vunpack.c.l.b16 %v712
        %v747 = vunpack.c.l.b16 %v713
        %v748 = vunpack.c.l.b16 %v714
        %v749 = vunpack.c.l.b16 %v715
        %v750 = vunpack.c.l.b16 %v716
        %v751 = vunpack.c.l.b16 %v717
        %v752 = vunpack.c.l.b16 %v718
        %v753 = vunpack.c.l.b16 %v719
        %v754 = vunpack.c.l.b16 %v720
        %v755 = vunpack.c.l.b16 %v721
        %v756 = vunpack.c.l.b16 %v722
        %v757 = vunpack.c.l.b16 %v723
        %v758 = vpack.c.b16 %v743, %v742
        %v759 = vpack.c.b16 %v745, %v744
        %v760 = vpack.c.b16 %v747, %v746
        %v761 = vpack.c.b16 %v749, %v748
        %v762 = vpack.c.b16 %v751, %v750
        %v763 = vpack.c.b16 %v753, %v752
        %v764 = vpack.c.b16 %v755, %v754
        %v765 = vpack.c.b16 %v757, %v756
        %774 = vmatpush.bf16.msra.mxu0 %v765
        %775 = vmatpush.bf16.msra.mxu0 %v764
        %776 = vmatpush.bf16.msra.mxu0 %v763
        %777 = vmatpush.bf16.msra.mxu0 %v762
        %778 = vmatpush.bf16.msra.mxu0 %v761
        %779 = vmatpush.bf16.msra.mxu0 %v760
        %780 = vmatpush.bf16.msra.mxu0 %v759
        %781 = vmatpush.bf16.msra.mxu0 %v758
        %782 = vmatmul.bf16.gmra.mxu0 %v707
        %v783 = vpop.f32.mrf.mxu0
        %v784 = vadd.f32 %v725, %v783
        %v785 = vpop.f32.mrf.mxu0
        %786 = vdwg.mxu0
        %vm787 = vcmp.gt.f32.partialorder %v784, 0.0
        %v788 = vmul.f32 %v784, 0.2
        %v789 = vsel %vm787, %v784, %v788
        %v790 = vpack.c.bf16 %v789, %v789
        %s791 = scalar_lea.vmem [#allocation8], 64
        %v792 = vld [vmem:[%s791] sm:$0xf]
        %v793 = vld [vmem:[%s791 + $0x4] sm:$0xf]
        %v794 = vld [vmem:[%s791 + $0x8] sm:$0xf]
        %v795 = vld [vmem:[%s791 + $0xc] sm:$0xf]
        %v796 = vld [vmem:[%s791 + $0x10] sm:$0xf]
        %v797 = vld [vmem:[%s791 + $0x14] sm:$0xf]
        %v798 = vld [vmem:[%s791 + $0x18] sm:$0xf]
        %v799 = vld [vmem:[%s791 + $0x1c] sm:$0xf]
        %v800 = vld [vmem:[%s791 + $0x20] sm:$0xf]
        %v801 = vld [vmem:[%s791 + $0x24] sm:$0xf]
        %v802 = vld [vmem:[%s791 + $0x28] sm:$0xf]
        %v803 = vld [vmem:[%s791 + $0x2c] sm:$0xf]
        %v804 = vld [vmem:[%s791 + $0x30] sm:$0xf]
        %v805 = vld [vmem:[%s791 + $0x34] sm:$0xf]
        %v806 = vld [vmem:[%s791 + $0x38] sm:$0xf]
        %v807 = vld [vmem:[%s791 + $0x3c] sm:$0xf]
        %v808 = vld [vmem:[#allocation10 + $0x2] sm:$0x1]
        %v809 = vperm.slane %v808, 0
        %v826 = vunpack.c.l.b16 %v792
        %v827 = vunpack.c.l.b16 %v793
        %v828 = vunpack.c.l.b16 %v794
        %v829 = vunpack.c.l.b16 %v795
        %v830 = vunpack.c.l.b16 %v796
        %v831 = vunpack.c.l.b16 %v797
        %v832 = vunpack.c.l.b16 %v798
        %v833 = vunpack.c.l.b16 %v799
        %v834 = vunpack.c.l.b16 %v800
        %v835 = vunpack.c.l.b16 %v801
        %v836 = vunpack.c.l.b16 %v802
        %v837 = vunpack.c.l.b16 %v803
        %v838 = vunpack.c.l.b16 %v804
        %v839 = vunpack.c.l.b16 %v805
        %v840 = vunpack.c.l.b16 %v806
        %v841 = vunpack.c.l.b16 %v807
        %v842 = vpack.c.b16 %v827, %v826
        %v843 = vpack.c.b16 %v829, %v828
        %v844 = vpack.c.b16 %v831, %v830
        %v845 = vpack.c.b16 %v833, %v832
        %v846 = vpack.c.b16 %v835, %v834
        %v847 = vpack.c.b16 %v837, %v836
        %v848 = vpack.c.b16 %v839, %v838
        %v849 = vpack.c.b16 %v841, %v840
        %858 = vmatpush.bf16.msra.mxu0 %v849
        %859 = vmatpush.bf16.msra.mxu0 %v848
        %860 = vmatpush.bf16.msra.mxu0 %v847
        %861 = vmatpush.bf16.msra.mxu0 %v846
        %862 = vmatpush.bf16.msra.mxu0 %v845
        %863 = vmatpush.bf16.msra.mxu0 %v844
        %864 = vmatpush.bf16.msra.mxu0 %v843
        %865 = vmatpush.bf16.msra.mxu0 %v842
        %866 = vmatmul.bf16.gmra.mxu0 %v790
        %v867 = vpop.f32.mrf.mxu0
        %v868 = vadd.f32 %v809, %v867
        %v869 = vpop.f32.mrf.mxu0
        %870 = vdwg.mxu0
        %vm871 = vcmp.gt.f32.partialorder %v868, 0.0
        %v872 = vmul.f32 %v868, 0.2
        %v873 = vsel %vm871, %v868, %v872
        %v874 = vperm.slane %v545, 0
        %v875 = vmul.f32 %v873, %v874
        %v876 = vperm.slane %v665, 0
        %v877 = vadd.f32 %v875, %v876
        %vm878 = vcmp.gt.f32.partialorder %v877, 0.0
        %v879 = vmul.f32 %v877, 0.2
        %v880 = vsel %vm878, %v877, %v879
        %881 = vst [vmem:[%s425] sm:$0xff] %v880
        %s882 = sand.u32 %s210, 1
        %s883 = scalar_lea.sflag [#allocation4], %s882
        %s884 = sand.u32 %s210, 1
        %s885 = smul.addr %s884, 8
        %s886 = scalar_lea.vmem [#allocation14], %s885
        // Predicated region
        $region77: #{tpu_custom_call.1} parent=47 // pred_check
          %p887 = pneg %p220
        $region78: #{tpu_custom_call.1} parent=47 // pred_check_branch
          %889 = sbr.rel (%p887) target = $region80
        $region79: #{tpu_custom_call.1} parent=47 // pred_region
          %891 = vsyncadd %s883, 0
          %s892 = sadd.s32 %s34, %s33
          %s893 = smul.addr %s892, 8
          %s894 = scalar_lea.hbm %s7, %s893
          %s896 = sshll.u32 %s886, 4
          %s897 = int_to_ptr.vmem [resolvable:$true] %s896
          %s898 = sshll.u32 %s894, 4
          %s899 = int_to_ptr.hbm [resolvable:$true] %s898
          %901 = dma.vmem_to_hbm [thread:$0]  %s897, 128, %s899, %s883
        $region80: #{tpu_custom_call.1} parent=47 // pred_fallthru
          _
      $region48: #{tpu_custom_call.1} parent=5 // pred_fallthru
        _
      %p902 = scmp.le.s32.totalorder 2, %s24
      // Predicated region
      $region81: #{tpu_custom_call.1} parent=5 // pred_check
        %p903 = pneg %p902
      $region82: #{tpu_custom_call.1} parent=5 // pred_check_branch
        %905 = sbr.rel (%p903) target = $region84
      $region83: #{tpu_custom_call.1} parent=5 // pred_region
        %s906 = ssub.s32 %s24, 2
        // Predicated region
        $region85: #{tpu_custom_call.1} parent=83 // pred_check
          %p907 = pneg %p226
        $region86: #{tpu_custom_call.1} parent=83 // pred_check_branch
          %909 = sbr.rel (%p907) target = $region88
        $region87: #{tpu_custom_call.1} parent=83 // pred_region
          %s910 = sand.u32 %s211, 1
          %s911 = scalar_lea.sflag [#allocation4], %s910
          %s912 = sand.u32 %s211, 1
          %s913 = smul.addr %s912, 8
          %s914 = scalar_lea.vmem [#allocation14], %s913
          %916 = dma.done %s911, 128
        $region88: #{tpu_custom_call.1} parent=83 // pred_fallthru
          _
      $region84: #{tpu_custom_call.1} parent=5 // pred_fallthru
        _
    $region6: #{tpu_custom_call.1} parent=1 // loop_footer
      %s28 = sadd.s32 1, %s24
    $region7: #{tpu_custom_call.1} parent=1 // loop_footer_branch
      %23 = sbr.rel target = $region3
    $region8: #{tpu_custom_call.1} parent=1 // loop_exit
      _
    %917 = vsyncpa [#allocation3], 1
    %s918 = scalar_lea.sflag [#allocation3], 1
    %919 = vsyncpa %s918, 1
    %920 = vsyncpa [#allocation6], 1
    %s921 = scalar_lea.sflag [#allocation6], 1
    %922 = vsyncpa %s921, 1
    %923 = vsyncpa [#allocation9], 1
    %924 = vsyncpa [#allocation12], 1
    %925 = vsyncpa [#allocation4], 1
    %s926 = scalar_lea.sflag [#allocation4], 1
    %927 = vsyncpa %s926, 1

</llo_original>
